<compile_context>
chip_gen: v7x
topology: tpu7x:2x2x1
jax: 0.10.0
libtpu: 0.0.40
codegen_flags: <defaults>
</compile_context>

<pallas_src>
import numpy as np

import jax
import jax.numpy as jnp
from jax.experimental import pallas as pl
from jax.experimental.pallas import tpu as pltpu


def _round_up(x, m):
    return ((x + m - 1) // m) * m


def _vmem_limit_bytes():
    """Generation-aware scoped-VMEM limit (v7x has 64 MiB physical VMEM)."""
    try:
        kind = jax.devices()[0].device_kind.lower()
    except Exception:  # pragma: no cover - defensive
        kind = ""
    if "v7" in kind:
        return 48 * 1024 * 1024   # headroom out of 64 MiB physical
    return 96 * 1024 * 1024       # v5e / v6e: 128 MiB physical


def _pick_row_tile(H, W, cin_p, cout_p, kkc_max, n_masks, nb, n_batch, halo,
                   w_bytes, vmem_limit):
    """Largest row tile whose working set fits ~0.85x the VMEM limit, keeps
    lane-dense (multiple-of-128) output stores, and (preferably) gives an even
    total grid so v7x's two TensorCores both get work."""
    budget = int(0.85 * vmem_limit)

    def vmem_use(t):
        thw = t * W
        slab = cin_p * (t + 2 * halo) * W * 2        # bf16 slab scratch
        col = kkc_max * thw * 2                      # bf16 im2col scratch
        outb = nb * cout_p * thw * 4 * 2             # fp32 out tile, dbl-buffered
        maskb = n_masks * cin_p * thw * 2 * 2        # bf16 masks, dbl-buffered
        return slab + col + outb + maskb + 2 * w_bytes + nb * cout_p * 4 * 2

    # candidates: divide H; keep output stores lane-dense unless t == H
    cands = [t for t in range(1, H + 1)
             if H % t == 0 and ((t * W) % 128 == 0 or t == H)]
    ok = [t for t in cands if vmem_use(t) <= budget] or [min(cands)]
    even = [t for t in ok
            if (n_batch * (H // t)) % 2 == 0 and n_batch * (H // t) >= 2] or ok
    return max(even)


def aspp_forward(x_nchw, params):
    """Matches ASPPModule.forward (eval mode): returns a list of NCHW tensors."""
    N, Cin, H, W = x_nchw.shape
    NB = len(params)
    Cout = params[0]["scale"].shape[0]

    Cin_p = _round_up(Cin, 8)
    Cout_p = _round_up(Cout, 8)

    branch_geom = []
    max_pad = 0
    for p in params:
        K, d = p["K"], p["dilation"]
        pad = 0 if K == 1 else d
        branch_geom.append((K, d, pad))
        max_pad = max(max_pad, pad)
    assert max_pad < W, "dilation must be smaller than the feature-map width"

    P = max_pad + 1                       # H-halo rows per side (+1 keeps all
                                          # flat tap windows in-bounds)
    KKC = [K * K * Cin_p for (K, _, _) in branch_geom]
    KKC_max = max(KKC)

    # distinct horizontal shifts that need a zero-padding mask
    shift_vals = sorted({kx * d - pad
                         for (K, d, pad) in branch_geom
                         for kx in range(K) if kx * d - pad != 0})
    shift_slot = {cs: i for i, cs in enumerate(shift_vals)}
    n_masks = max(1, len(shift_vals))

    # ---- weights: BN scale folded in, (Cout_p, K*K*Cin_p), bf16 ----
    w_list = []
    w_bytes = 0
    for p, (K, d, pad) in zip(params, branch_geom):
        w = p["w_oihw"] * p["scale"][:, None, None, None]       # fold BN scale
        w = jnp.pad(w, ((0, Cout_p - Cout), (0, Cin_p - Cin), (0, 0), (0, 0)))
        w = jnp.transpose(w, (0, 2, 3, 1)).reshape(Cout_p, K * K * Cin_p)
        w = w.astype(jnp.bfloat16)
        w_list.append(w)
        w_bytes += w.size * 2

    TH = _pick_row_tile(H, W, Cin_p, Cout_p, KKC_max, n_masks, NB, N, P,
                        w_bytes, _vmem_limit_bytes())
    n_h = H // TH
    THW = TH * W
    slab_rows = TH + 2 * P
    slab_len = slab_rows * W

    # ---- padded bf16 input, flattened per channel: ONE HBM array; the kernel
    #      DMAs overlapping halo windows straight out of it (no duplication) --
    xp = jnp.pad(x_nchw, ((0, 0), (0, Cin_p - Cin), (P, P), (0, 0)))
    x_flat = xp.astype(jnp.bfloat16).reshape(N, Cin_p, (H + 2 * P) * W)

    # ---- pre-broadcast 0/1 lane masks for horizontal (W) zero padding ----
    col_idx = np.tile(np.arange(W), TH)
    masks_np = np.ones((n_masks, Cin_p, THW), np.float32)
    for cs, i in shift_slot.items():
        valid = ((col_idx + cs >= 0) & (col_idx + cs < W)).astype(np.float32)
        masks_np[i] = np.broadcast_to(valid, (Cin_p, THW))
    masks = jnp.asarray(masks_np, dtype=jnp.bfloat16)

    # ---- folded-BN bias, stacked over branches ----
    biases = jnp.stack(
        [jnp.pad(p["bias"], (0, Cout_p - Cout)) for p in params]
    ).reshape(NB, Cout_p, 1).astype(jnp.float32)

    lane_hint = 128 if THW % 128 == 0 else None

    # ---- fused kernel: all branches for one (image, row-tile) ----
    def kernel(x_hbm, m_ref, *args):
        w_refs = args[:NB]
        b_ref = args[NB]
        o_ref = args[NB + 1]
        slab_ref = args[NB + 2]           # (Cin_p, slab_len) bf16 VMEM
        col_ref = args[NB + 3]            # (KKC_max, THW)   bf16 VMEM (im2col)
        sem = args[NB + 4]

        n = pl.program_id(0)
        h = pl.program_id(1)
        row_off = h * THW
        if lane_hint is not None:
            row_off = pl.multiple_of(row_off, lane_hint)

        # overlapping (TH + 2P)-row halo window, HBM -> VMEM (one DMA/step)
        cp = pltpu.make_async_copy(
            x_hbm.at[n, :, pl.ds(row_off, slab_len)], slab_ref, sem)
        cp.start()
        cp.wait()

        # hoisted, pre-broadcast horizontal-padding masks (one load each)
        mvals = {cs: m_ref[i] for cs, i in shift_slot.items()}

        for b, (K, d, pad) in enumerate(branch_geom):
            if K == 1:
                patch = slab_ref[:, P * W: P * W + THW]          # (Cin_p, THW)
                acc = jnp.dot(w_refs[b][...], patch,
                              preferred_element_type=jnp.float32)
            else:
                # im2col the K*K shifted taps into one (K*K*Cin_p, THW) slab,
                # masking the horizontal wraparound while writing.
                for ky in range(K):
                    dy = ky * d - pad + P
                    for kx in range(K):
                        cs = kx * d - pad
                        t = ky * K + kx
                        start = dy * W + cs                       # static
                        patch = slab_ref[:, start: start + THW]
                        if cs != 0:
                            patch = patch * mvals[cs]
                        col_ref[t * Cin_p:(t + 1) * Cin_p, :] = patch
                acc = jnp.dot(w_refs[b][...], col_ref[:KKC[b], :],
                              preferred_element_type=jnp.float32)
            y = jnp.maximum(acc + b_ref[b], 0.0)     # folded-BN bias + ReLU
            o_ref[b, 0] = y.astype(o_ref.dtype)      # lane-dense store

    out = pl.pallas_call(
        kernel,
        out_shape=jax.ShapeDtypeStruct((NB, N, Cout_p, H * W), jnp.float32),
        grid=(N, n_h),
        in_specs=[
            pl.BlockSpec(memory_space=pl.ANY),                     # raw HBM ref
            pl.BlockSpec((n_masks, Cin_p, THW), lambda n, h: (0, 0, 0)),
            *[pl.BlockSpec(w.shape, lambda n, h: (0, 0)) for w in w_list],
            pl.BlockSpec((NB, Cout_p, 1), lambda n, h: (0, 0, 0)),
        ],
        out_specs=pl.BlockSpec((NB, 1, Cout_p, THW), lambda n, h: (0, n, 0, h)),
        scratch_shapes=[
            pltpu.VMEM((Cin_p, slab_len), jnp.bfloat16),
            pltpu.VMEM((KKC_max, THW), jnp.bfloat16),
            pltpu.SemaphoreType.DMA,
        ],
        compiler_params=pltpu.CompilerParams(
            dimension_semantics=("parallel", "parallel"),
            vmem_limit_bytes=_vmem_limit_bytes(),
        ),
    )(x_flat, masks, *w_list, biases)

    # one combined relayout, then cheap per-branch leading-axis views
    out = out[:, :, :Cout, :].reshape(NB, N, Cout, H, W)
    return [out[b] for b in range(NB)]


def init_aspp_params(key, dilations, in_channels, channels):
    """Deterministic parameter init matching the PyTorch module's shapes."""
    params = []
    eps = 1e-5
    for i, d in enumerate(dilations):
        K = 1 if d == 1 else 3
        kw, kg, kb, km, kv = jax.random.split(jax.random.fold_in(key, i), 5)
        w_oihw = 0.1 * jax.random.normal(
            kw, (channels, in_channels, K, K), jnp.float32
        )
        gamma = 1.0 + 0.1 * jax.random.normal(kg, (channels,), jnp.float32)
        beta = 0.1 * jax.random.normal(kb, (channels,), jnp.float32)
        running_mean = 0.05 * jax.random.normal(km, (channels,), jnp.float32)
        running_var = jax.random.uniform(
            kv, (channels,), jnp.float32, minval=0.5, maxval=1.5
        )
        scale = gamma / jnp.sqrt(running_var + eps)   # folded inference BN
        bias = beta - running_mean * scale
        params.append(
            dict(w_oihw=w_oihw, scale=scale, bias=bias, dilation=d, K=K)
        )
    return params


def _reference_branch(x_nchw, p):
    """Pure-JAX reference with the same math as the kernel: bf16 conv with the
    BN scale folded into the weights, fp32 accumulate, bias + ReLU."""
    d, K = p["dilation"], p["K"]
    pad = 0 if K == 1 else d
    w_folded = (p["w_oihw"] * p["scale"][:, None, None, None]).astype(jnp.bfloat16)
    y = jax.lax.conv_general_dilated(
        x_nchw.astype(jnp.bfloat16),
        w_folded,
        window_strides=(1, 1),
        padding=((pad, pad), (pad, pad)),
        rhs_dilation=(d, d),
        dimension_numbers=("NCHW", "OIHW", "NCHW"),
        preferred_element_type=jnp.float32,
    )
    y = y + p["bias"].reshape(1, -1, 1, 1)
    return jnp.maximum(y, 0.0)


if __name__ == "__main__":
    key = jax.random.PRNGKey(0)

    dilations = (1, 2, 3)
    in_channels = 4
    channels = 8
    N, H, W = 2, 16, 16

    kx, kp = jax.random.split(key)
    x_nchw = jax.random.normal(kx, (N, in_channels, H, W), jnp.float32)
    params = init_aspp_params(kp, dilations, in_channels, channels)

    outs = aspp_forward(x_nchw, params)
    outs = [jax.block_until_ready(o) for o in outs]

    for o, p in zip(outs, params):
        assert o.shape == (N, channels, H, W), o.shape
        ref = _reference_branch(x_nchw, p)
        if not jnp.allclose(o, ref, atol=5e-3, rtol=5e-3):
            raise AssertionError(
                f"mismatch for dilation={p['dilation']}: "
                f"max err {jnp.max(jnp.abs(o - ref))}"
            )

    print("KERNEL_OK")
</pallas_src>

<mosaic_0001>
module attributes {stable_mosaic.version = 11 : i64} {
  func.func @kernel(%arg0: i32, %arg1: i32, %arg2: memref<2x8x384xbf16, #tpu.memory_space<any>>, %arg3: memref<4x8x256xbf16, #tpu.memory_space<vmem>>, %arg4: memref<8x8xbf16, #tpu.memory_space<vmem>>, %arg5: memref<8x72xbf16, #tpu.memory_space<vmem>>, %arg6: memref<8x72xbf16, #tpu.memory_space<vmem>>, %arg7: memref<3x8x1xf32, #tpu.memory_space<vmem>>, %arg8: memref<3x1x8x256xf32, #tpu.memory_space<vmem>>, %arg9: memref<8x384xbf16, #tpu.memory_space<vmem>>, %arg10: memref<72x256xbf16, #tpu.memory_space<vmem>>, %arg11: memref<!tpu.dma_semaphore, #tpu.memory_space<semaphore_mem>>) attributes {dimension_semantics = [#tpu.dimension_semantics<parallel>, #tpu.dimension_semantics<parallel>], iteration_bounds = array<i64: 2, 1>, scalar_prefetch = 0 : i64, scratch_operands = 3 : i64, tpu.core_type = #tpu.core_type<tc>, window_params = [{}, {pipeline_mode = #tpu.pipeline_mode<synchronous>, transform_indices = @transform_1, window_bounds = array<i64: 4, 8, 256>}, {pipeline_mode = #tpu.pipeline_mode<synchronous>, transform_indices = @transform_2, window_bounds = array<i64: 8, 8>}, {pipeline_mode = #tpu.pipeline_mode<synchronous>, transform_indices = @transform_3, window_bounds = array<i64: 8, 72>}, {pipeline_mode = #tpu.pipeline_mode<synchronous>, transform_indices = @transform_4, window_bounds = array<i64: 8, 72>}, {pipeline_mode = #tpu.pipeline_mode<synchronous>, transform_indices = @transform_5, window_bounds = array<i64: 3, 8, 1>}, {transform_indices = @transform_6, window_bounds = array<i64: 3, 1, 8, 256>}]} {
    %c256_i32 = arith.constant 256 : i32
    %0 = arith.muli %arg1, %c256_i32 : i32
    %1 = tpu.assume_multiple %0, 128 : i32
    %c0_i32 = arith.constant 0 : i32
    %2 = tpu.memref_slice %arg2[%arg0, %c0_i32, %1] : memref<2x8x384xbf16, #tpu.memory_space<any>> -> memref<1x8x384xbf16, #tpu.memory_space<any>>
    %3 = tpu.memref_squeeze %2 : memref<1x8x384xbf16, #tpu.memory_space<any>> -> memref<8x384xbf16, #tpu.memory_space<any>>
    tpu.enqueue_dma source(%3 : memref<8x384xbf16, #tpu.memory_space<any>>) target(%arg9 : memref<8x384xbf16, #tpu.memory_space<vmem>>) target_semaphore(%arg11 : memref<!tpu.dma_semaphore, #tpu.memory_space<semaphore_mem>>)
    %c0_i32_0 = arith.constant 0 : i32
    %4 = tpu.memref_slice %arg2[%arg0, %c0_i32_0, %1] : memref<2x8x384xbf16, #tpu.memory_space<any>> -> memref<1x8x384xbf16, #tpu.memory_space<any>>
    %5 = tpu.memref_squeeze %4 : memref<1x8x384xbf16, #tpu.memory_space<any>> -> memref<8x384xbf16, #tpu.memory_space<any>>
    tpu.wait_dma2 semaphore(%arg11 : memref<!tpu.dma_semaphore, #tpu.memory_space<semaphore_mem>>) src(%5 : memref<8x384xbf16, #tpu.memory_space<any>>) dst(%arg9 : memref<8x384xbf16, #tpu.memory_space<vmem>>)
    %c0 = arith.constant 0 : index
    %c0_1 = arith.constant 0 : index
    %c0_2 = arith.constant 0 : index
    %6 = vector.load %arg3[%c0, %c0_1, %c0_2] : memref<4x8x256xbf16, #tpu.memory_space<vmem>>, vector<1x8x256xbf16>
    %7 = vector.shape_cast %6 : vector<1x8x256xbf16> to vector<8x256xbf16>
    %c1 = arith.constant 1 : index
    %c0_3 = arith.constant 0 : index
    %c0_4 = arith.constant 0 : index
    %8 = vector.load %arg3[%c1, %c0_3, %c0_4] : memref<4x8x256xbf16, #tpu.memory_space<vmem>>, vector<1x8x256xbf16>
    %9 = vector.shape_cast %8 : vector<1x8x256xbf16> to vector<8x256xbf16>
    %c2 = arith.constant 2 : index
    %c0_5 = arith.constant 0 : index
    %c0_6 = arith.constant 0 : index
    %10 = vector.load %arg3[%c2, %c0_5, %c0_6] : memref<4x8x256xbf16, #tpu.memory_space<vmem>>, vector<1x8x256xbf16>
    %11 = vector.shape_cast %10 : vector<1x8x256xbf16> to vector<8x256xbf16>
    %c3 = arith.constant 3 : index
    %c0_7 = arith.constant 0 : index
    %c0_8 = arith.constant 0 : index
    %12 = vector.load %arg3[%c3, %c0_7, %c0_8] : memref<4x8x256xbf16, #tpu.memory_space<vmem>>, vector<1x8x256xbf16>
    %13 = vector.shape_cast %12 : vector<1x8x256xbf16> to vector<8x256xbf16>
    %c0_9 = arith.constant 0 : index
    %c64 = arith.constant 64 : index
    %14 = vector.load %arg9[%c0_9, %c64] : memref<8x384xbf16, #tpu.memory_space<vmem>>, vector<8x256xbf16>
    %c0_10 = arith.constant 0 : index
    %c0_11 = arith.constant 0 : index
    %15 = vector.load %arg4[%c0_10, %c0_11] : memref<8x8xbf16, #tpu.memory_space<vmem>>, vector<8x8xbf16>
    %cst = arith.constant dense<0.000000e+00> : vector<8x256xf32>
    %16 = tpu.matmul %15, %14, %cst {dimension_numbers = #tpu.dot_dimension_numbers<[1], [0], [0], [1], [0, 0, 1, 1], [], []>} : vector<8x8xbf16>, vector<8x256xbf16>, vector<8x256xf32> -> vector<8x256xf32>
    %c0_12 = arith.constant 0 : index
    %c0_13 = arith.constant 0 : index
    %c0_14 = arith.constant 0 : index
    %17 = vector.load %arg7[%c0_12, %c0_13, %c0_14] : memref<3x8x1xf32, #tpu.memory_space<vmem>>, vector<1x8x1xf32>
    %18 = vector.shape_cast %17 : vector<1x8x1xf32> to vector<8x1xf32>
    %19 = vector.broadcast %18 : vector<8x1xf32> to vector<8x256xf32>
    %20 = arith.addf %16, %19 : vector<8x256xf32>
    %cst_15 = arith.constant 0.000000e+00 : f32
    %21 = vector.broadcast %cst_15 : f32 to vector<8x256xf32>
    %22 = arith.maximumf %20, %21 : vector<8x256xf32>
    %c0_16 = arith.constant 0 : index
    %c0_17 = arith.constant 0 : index
    %c0_18 = arith.constant 0 : index
    %c0_19 = arith.constant 0 : index
    %23 = vector.load %arg8[%c0_16, %c0_17, %c0_18, %c0_19] : memref<3x1x8x256xf32, #tpu.memory_space<vmem>>, vector<1x1x8x256xf32>
    %24 = vector.shape_cast %23 : vector<1x1x8x256xf32> to vector<8x256xf32>
    %25 = vector.shape_cast %22 : vector<8x256xf32> to vector<1x1x8x256xf32>
    tpu.vector_store %arg8[%c0_16, %c0_17, %c0_18, %c0_19], %25 {strides = array<i32>} : memref<3x1x8x256xf32, #tpu.memory_space<vmem>>, vector<1x1x8x256xf32>,
    %c0_20 = arith.constant 0 : index
    %c30 = arith.constant 30 : index
    %26 = vector.load %arg9[%c0_20, %c30] : memref<8x384xbf16, #tpu.memory_space<vmem>>, vector<8x256xbf16>
    %27 = arith.mulf %26, %9 : vector<8x256xbf16>
    %c0_21 = arith.constant 0 : index
    %c0_22 = arith.constant 0 : index
    %28 = vector.load %arg10[%c0_21, %c0_22] : memref<72x256xbf16, #tpu.memory_space<vmem>>, vector<8x256xbf16>
    tpu.vector_store %arg10[%c0_21, %c0_22], %27 {strides = array<i32>} : memref<72x256xbf16, #tpu.memory_space<vmem>>, vector<8x256xbf16>,
    %c0_23 = arith.constant 0 : index
    %c32 = arith.constant 32 : index
    %29 = vector.load %arg9[%c0_23, %c32] : memref<8x384xbf16, #tpu.memory_space<vmem>>, vector<8x256xbf16>
    %c8 = arith.constant 8 : index
    %c0_24 = arith.constant 0 : index
    %30 = vector.load %arg10[%c8, %c0_24] : memref<72x256xbf16, #tpu.memory_space<vmem>>, vector<8x256xbf16>
    tpu.vector_store %arg10[%c8, %c0_24], %29 {strides = array<i32>} : memref<72x256xbf16, #tpu.memory_space<vmem>>, vector<8x256xbf16>,
    %c0_25 = arith.constant 0 : index
    %c34 = arith.constant 34 : index
    %31 = vector.load %arg9[%c0_25, %c34] : memref<8x384xbf16, #tpu.memory_space<vmem>>, vector<8x256xbf16>
    %32 = arith.mulf %31, %11 : vector<8x256xbf16>
    %c16 = arith.constant 16 : index
    %c0_26 = arith.constant 0 : index
    %33 = vector.load %arg10[%c16, %c0_26] : memref<72x256xbf16, #tpu.memory_space<vmem>>, vector<8x256xbf16>
    tpu.vector_store %arg10[%c16, %c0_26], %32 {strides = array<i32>} : memref<72x256xbf16, #tpu.memory_space<vmem>>, vector<8x256xbf16>,
    %c0_27 = arith.constant 0 : index
    %c62 = arith.constant 62 : index
    %34 = vector.load %arg9[%c0_27, %c62] : memref<8x384xbf16, #tpu.memory_space<vmem>>, vector<8x256xbf16>
    %35 = arith.mulf %34, %9 : vector<8x256xbf16>
    %c24 = arith.constant 24 : index
    %c0_28 = arith.constant 0 : index
    %36 = vector.load %arg10[%c24, %c0_28] : memref<72x256xbf16, #tpu.memory_space<vmem>>, vector<8x256xbf16>
    tpu.vector_store %arg10[%c24, %c0_28], %35 {strides = array<i32>} : memref<72x256xbf16, #tpu.memory_space<vmem>>, vector<8x256xbf16>,
    %c0_29 = arith.constant 0 : index
    %c64_30 = arith.constant 64 : index
    %37 = vector.load %arg9[%c0_29, %c64_30] : memref<8x384xbf16, #tpu.memory_space<vmem>>, vector<8x256xbf16>
    %c32_31 = arith.constant 32 : index
    %c0_32 = arith.constant 0 : index
    %38 = vector.load %arg10[%c32_31, %c0_32] : memref<72x256xbf16, #tpu.memory_space<vmem>>, vector<8x256xbf16>
    tpu.vector_store %arg10[%c32_31, %c0_32], %37 {strides = array<i32>} : memref<72x256xbf16, #tpu.memory_space<vmem>>, vector<8x256xbf16>,
    %c0_33 = arith.constant 0 : index
    %c66 = arith.constant 66 : index
    %39 = vector.load %arg9[%c0_33, %c66] : memref<8x384xbf16, #tpu.memory_space<vmem>>, vector<8x256xbf16>
    %40 = arith.mulf %39, %11 : vector<8x256xbf16>
    %c40 = arith.constant 40 : index
    %c0_34 = arith.constant 0 : index
    %41 = vector.load %arg10[%c40, %c0_34] : memref<72x256xbf16, #tpu.memory_space<vmem>>, vector<8x256xbf16>
    tpu.vector_store %arg10[%c40, %c0_34], %40 {strides = array<i32>} : memref<72x256xbf16, #tpu.memory_space<vmem>>, vector<8x256xbf16>,
    %c0_35 = arith.constant 0 : index
    %c94 = arith.constant 94 : index
    %42 = vector.load %arg9[%c0_35, %c94] : memref<8x384xbf16, #tpu.memory_space<vmem>>, vector<8x256xbf16>
    %43 = arith.mulf %42, %9 : vector<8x256xbf16>
    %c48 = arith.constant 48 : index
    %c0_36 = arith.constant 0 : index
    %44 = vector.load %arg10[%c48, %c0_36] : memref<72x256xbf16, #tpu.memory_space<vmem>>, vector<8x256xbf16>
    tpu.vector_store %arg10[%c48, %c0_36], %43 {strides = array<i32>} : memref<72x256xbf16, #tpu.memory_space<vmem>>, vector<8x256xbf16>,
    %c0_37 = arith.constant 0 : index
    %c96 = arith.constant 96 : index
    %45 = vector.load %arg9[%c0_37, %c96] : memref<8x384xbf16, #tpu.memory_space<vmem>>, vector<8x256xbf16>
    %c56 = arith.constant 56 : index
    %c0_38 = arith.constant 0 : index
    %46 = vector.load %arg10[%c56, %c0_38] : memref<72x256xbf16, #tpu.memory_space<vmem>>, vector<8x256xbf16>
    tpu.vector_store %arg10[%c56, %c0_38], %45 {strides = array<i32>} : memref<72x256xbf16, #tpu.memory_space<vmem>>, vector<8x256xbf16>,
    %c0_39 = arith.constant 0 : index
    %c98 = arith.constant 98 : index
    %47 = vector.load %arg9[%c0_39, %c98] : memref<8x384xbf16, #tpu.memory_space<vmem>>, vector<8x256xbf16>
    %48 = arith.mulf %47, %11 : vector<8x256xbf16>
    %c64_40 = arith.constant 64 : index
    %c0_41 = arith.constant 0 : index
    %49 = vector.load %arg10[%c64_40, %c0_41] : memref<72x256xbf16, #tpu.memory_space<vmem>>, vector<8x256xbf16>
    tpu.vector_store %arg10[%c64_40, %c0_41], %48 {strides = array<i32>} : memref<72x256xbf16, #tpu.memory_space<vmem>>, vector<8x256xbf16>,
    %c0_42 = arith.constant 0 : index
    %c0_43 = arith.constant 0 : index
    %50 = vector.load %arg5[%c0_42, %c0_43] : memref<8x72xbf16, #tpu.memory_space<vmem>>, vector<8x72xbf16>
    %c0_44 = arith.constant 0 : index
    %c0_45 = arith.constant 0 : index
    %51 = vector.load %arg10[%c0_44, %c0_45] : memref<72x256xbf16, #tpu.memory_space<vmem>>, vector<72x256xbf16>
    %cst_46 = arith.constant dense<0.000000e+00> : vector<8x256xf32>
    %52 = tpu.matmul %50, %51, %cst_46 {dimension_numbers = #tpu.dot_dimension_numbers<[1], [0], [0], [1], [0, 0, 1, 1], [], []>} : vector<8x72xbf16>, vector<72x256xbf16>, vector<8x256xf32> -> vector<8x256xf32>
    %c1_47 = arith.constant 1 : index
    %c0_48 = arith.constant 0 : index
    %c0_49 = arith.constant 0 : index
    %53 = vector.load %arg7[%c1_47, %c0_48, %c0_49] : memref<3x8x1xf32, #tpu.memory_space<vmem>>, vector<1x8x1xf32>
    %54 = vector.shape_cast %53 : vector<1x8x1xf32> to vector<8x1xf32>
    %55 = vector.broadcast %54 : vector<8x1xf32> to vector<8x256xf32>
    %56 = arith.addf %52, %55 : vector<8x256xf32>
    %cst_50 = arith.constant 0.000000e+00 : f32
    %57 = vector.broadcast %cst_50 : f32 to vector<8x256xf32>
    %58 = arith.maximumf %56, %57 : vector<8x256xf32>
    %c1_51 = arith.constant 1 : index
    %c0_52 = arith.constant 0 : index
    %c0_53 = arith.constant 0 : index
    %c0_54 = arith.constant 0 : index
    %59 = vector.load %arg8[%c1_51, %c0_52, %c0_53, %c0_54] : memref<3x1x8x256xf32, #tpu.memory_space<vmem>>, vector<1x1x8x256xf32>
    %60 = vector.shape_cast %59 : vector<1x1x8x256xf32> to vector<8x256xf32>
    %61 = vector.shape_cast %58 : vector<8x256xf32> to vector<1x1x8x256xf32>
    tpu.vector_store %arg8[%c1_51, %c0_52, %c0_53, %c0_54], %61 {strides = array<i32>} : memref<3x1x8x256xf32, #tpu.memory_space<vmem>>, vector<1x1x8x256xf32>,
    %c0_55 = arith.constant 0 : index
    %c13 = arith.constant 13 : index
    %62 = vector.load %arg9[%c0_55, %c13] : memref<8x384xbf16, #tpu.memory_space<vmem>>, vector<8x256xbf16>
    %63 = arith.mulf %62, %7 : vector<8x256xbf16>
    %c0_56 = arith.constant 0 : index
    %c0_57 = arith.constant 0 : index
    %64 = vector.load %arg10[%c0_56, %c0_57] : memref<72x256xbf16, #tpu.memory_space<vmem>>, vector<8x256xbf16>
    tpu.vector_store %arg10[%c0_56, %c0_57], %63 {strides = array<i32>} : memref<72x256xbf16, #tpu.memory_space<vmem>>, vector<8x256xbf16>,
    %c0_58 = arith.constant 0 : index
    %c16_59 = arith.constant 16 : index
    %65 = vector.load %arg9[%c0_58, %c16_59] : memref<8x384xbf16, #tpu.memory_space<vmem>>, vector<8x256xbf16>
    %c8_60 = arith.constant 8 : index
    %c0_61 = arith.constant 0 : index
    %66 = vector.load %arg10[%c8_60, %c0_61] : memref<72x256xbf16, #tpu.memory_space<vmem>>, vector<8x256xbf16>
    tpu.vector_store %arg10[%c8_60, %c0_61], %65 {strides = array<i32>} : memref<72x256xbf16, #tpu.memory_space<vmem>>, vector<8x256xbf16>,
    %c0_62 = arith.constant 0 : index
    %c19 = arith.constant 19 : index
    %67 = vector.load %arg9[%c0_62, %c19] : memref<8x384xbf16, #tpu.memory_space<vmem>>, vector<8x256xbf16>
    %68 = arith.mulf %67, %13 : vector<8x256xbf16>
    %c16_63 = arith.constant 16 : index
    %c0_64 = arith.constant 0 : index
    %69 = vector.load %arg10[%c16_63, %c0_64] : memref<72x256xbf16, #tpu.memory_space<vmem>>, vector<8x256xbf16>
    tpu.vector_store %arg10[%c16_63, %c0_64], %68 {strides = array<i32>} : memref<72x256xbf16, #tpu.memory_space<vmem>>, vector<8x256xbf16>,
    %c0_65 = arith.constant 0 : index
    %c61 = arith.constant 61 : index
    %70 = vector.load %arg9[%c0_65, %c61] : memref<8x384xbf16, #tpu.memory_space<vmem>>, vector<8x256xbf16>
    %71 = arith.mulf %70, %7 : vector<8x256xbf16>
    %c24_66 = arith.constant 24 : index
    %c0_67 = arith.constant 0 : index
    %72 = vector.load %arg10[%c24_66, %c0_67] : memref<72x256xbf16, #tpu.memory_space<vmem>>, vector<8x256xbf16>
    tpu.vector_store %arg10[%c24_66, %c0_67], %71 {strides = array<i32>} : memref<72x256xbf16, #tpu.memory_space<vmem>>, vector<8x256xbf16>,
    %c0_68 = arith.constant 0 : index
    %c64_69 = arith.constant 64 : index
    %73 = vector.load %arg9[%c0_68, %c64_69] : memref<8x384xbf16, #tpu.memory_space<vmem>>, vector<8x256xbf16>
    %c32_70 = arith.constant 32 : index
    %c0_71 = arith.constant 0 : index
    %74 = vector.load %arg10[%c32_70, %c0_71] : memref<72x256xbf16, #tpu.memory_space<vmem>>, vector<8x256xbf16>
    tpu.vector_store %arg10[%c32_70, %c0_71], %73 {strides = array<i32>} : memref<72x256xbf16, #tpu.memory_space<vmem>>, vector<8x256xbf16>,
    %c0_72 = arith.constant 0 : index
    %c67 = arith.constant 67 : index
    %75 = vector.load %arg9[%c0_72, %c67] : memref<8x384xbf16, #tpu.memory_space<vmem>>, vector<8x256xbf16>
    %76 = arith.mulf %75, %13 : vector<8x256xbf16>
    %c40_73 = arith.constant 40 : index
    %c0_74 = arith.constant 0 : index
    %77 = vector.load %arg10[%c40_73, %c0_74] : memref<72x256xbf16, #tpu.memory_space<vmem>>, vector<8x256xbf16>
    tpu.vector_store %arg10[%c40_73, %c0_74], %76 {strides = array<i32>} : memref<72x256xbf16, #tpu.memory_space<vmem>>, vector<8x256xbf16>,
    %c0_75 = arith.constant 0 : index
    %c109 = arith.constant 109 : index
    %78 = vector.load %arg9[%c0_75, %c109] : memref<8x384xbf16, #tpu.memory_space<vmem>>, vector<8x256xbf16>
    %79 = arith.mulf %78, %7 : vector<8x256xbf16>
    %c48_76 = arith.constant 48 : index
    %c0_77 = arith.constant 0 : index
    %80 = vector.load %arg10[%c48_76, %c0_77] : memref<72x256xbf16, #tpu.memory_space<vmem>>, vector<8x256xbf16>
    tpu.vector_store %arg10[%c48_76, %c0_77], %79 {strides = array<i32>} : memref<72x256xbf16, #tpu.memory_space<vmem>>, vector<8x256xbf16>,
    %c0_78 = arith.constant 0 : index
    %c112 = arith.constant 112 : index
    %81 = vector.load %arg9[%c0_78, %c112] : memref<8x384xbf16, #tpu.memory_space<vmem>>, vector<8x256xbf16>
    %c56_79 = arith.constant 56 : index
    %c0_80 = arith.constant 0 : index
    %82 = vector.load %arg10[%c56_79, %c0_80] : memref<72x256xbf16, #tpu.memory_space<vmem>>, vector<8x256xbf16>
    tpu.vector_store %arg10[%c56_79, %c0_80], %81 {strides = array<i32>} : memref<72x256xbf16, #tpu.memory_space<vmem>>, vector<8x256xbf16>,
    %c0_81 = arith.constant 0 : index
    %c115 = arith.constant 115 : index
    %83 = vector.load %arg9[%c0_81, %c115] : memref<8x384xbf16, #tpu.memory_space<vmem>>, vector<8x256xbf16>
    %84 = arith.mulf %83, %13 : vector<8x256xbf16>
    %c64_82 = arith.constant 64 : index
    %c0_83 = arith.constant 0 : index
    %85 = vector.load %arg10[%c64_82, %c0_83] : memref<72x256xbf16, #tpu.memory_space<vmem>>, vector<8x256xbf16>
    tpu.vector_store %arg10[%c64_82, %c0_83], %84 {strides = array<i32>} : memref<72x256xbf16, #tpu.memory_space<vmem>>, vector<8x256xbf16>,
    %c0_84 = arith.constant 0 : index
    %c0_85 = arith.constant 0 : index
    %86 = vector.load %arg6[%c0_84, %c0_85] : memref<8x72xbf16, #tpu.memory_space<vmem>>, vector<8x72xbf16>
    %c0_86 = arith.constant 0 : index
    %c0_87 = arith.constant 0 : index
    %87 = vector.load %arg10[%c0_86, %c0_87] : memref<72x256xbf16, #tpu.memory_space<vmem>>, vector<72x256xbf16>
    %cst_88 = arith.constant dense<0.000000e+00> : vector<8x256xf32>
    %88 = tpu.matmul %86, %87, %cst_88 {dimension_numbers = #tpu.dot_dimension_numbers<[1], [0], [0], [1], [0, 0, 1, 1], [], []>} : vector<8x72xbf16>, vector<72x256xbf16>, vector<8x256xf32> -> vector<8x256xf32>
    %c2_89 = arith.constant 2 : index
    %c0_90 = arith.constant 0 : index
    %c0_91 = arith.constant 0 : index
    %89 = vector.load %arg7[%c2_89, %c0_90, %c0_91] : memref<3x8x1xf32, #tpu.memory_space<vmem>>, vector<1x8x1xf32>
    %90 = vector.shape_cast %89 : vector<1x8x1xf32> to vector<8x1xf32>
    %91 = vector.broadcast %90 : vector<8x1xf32> to vector<8x256xf32>
    %92 = arith.addf %88, %91 : vector<8x256xf32>
    %cst_92 = arith.constant 0.000000e+00 : f32
    %93 = vector.broadcast %cst_92 : f32 to vector<8x256xf32>
    %94 = arith.maximumf %92, %93 : vector<8x256xf32>
    %c2_93 = arith.constant 2 : index
    %c0_94 = arith.constant 0 : index
    %c0_95 = arith.constant 0 : index
    %c0_96 = arith.constant 0 : index
    %95 = vector.load %arg8[%c2_93, %c0_94, %c0_95, %c0_96] : memref<3x1x8x256xf32, #tpu.memory_space<vmem>>, vector<1x1x8x256xf32>
    %96 = vector.shape_cast %95 : vector<1x1x8x256xf32> to vector<8x256xf32>
    %97 = vector.shape_cast %94 : vector<8x256xf32> to vector<1x1x8x256xf32>
    tpu.vector_store %arg8[%c2_93, %c0_94, %c0_95, %c0_96], %97 {strides = array<i32>} : memref<3x1x8x256xf32, #tpu.memory_space<vmem>>, vector<1x1x8x256xf32>,
    return
  }
  func.func @transform_1(%arg0: i32, %arg1: i32) -> (i32, i32, i32) {
    %c0_i32 = arith.constant 0 : i32
    %c0_i32_0 = arith.constant 0 : i32
    %c0_i32_1 = arith.constant 0 : i32
    %c0_i32_2 = arith.constant 0 : i32
    return %c0_i32, %c0_i32_0, %c0_i32_1 : i32, i32, i32
  }
  func.func @transform_2(%arg0: i32, %arg1: i32) -> (i32, i32) {
    %c0_i32 = arith.constant 0 : i32
    %c0_i32_0 = arith.constant 0 : i32
    %c0_i32_1 = arith.constant 0 : i32
    return %c0_i32, %c0_i32_0 : i32, i32
  }
  func.func @transform_3(%arg0: i32, %arg1: i32) -> (i32, i32) {
    %c0_i32 = arith.constant 0 : i32
    %c0_i32_0 = arith.constant 0 : i32
    %c0_i32_1 = arith.constant 0 : i32
    return %c0_i32, %c0_i32_0 : i32, i32
  }
  func.func @transform_4(%arg0: i32, %arg1: i32) -> (i32, i32) {
    %c0_i32 = arith.constant 0 : i32
    %c0_i32_0 = arith.constant 0 : i32
    %c0_i32_1 = arith.constant 0 : i32
    return %c0_i32, %c0_i32_0 : i32, i32
  }
  func.func @transform_5(%arg0: i32, %arg1: i32) -> (i32, i32, i32) {
    %c0_i32 = arith.constant 0 : i32
    %c0_i32_0 = arith.constant 0 : i32
    %c0_i32_1 = arith.constant 0 : i32
    %c0_i32_2 = arith.constant 0 : i32
    return %c0_i32, %c0_i32_0, %c0_i32_1 : i32, i32, i32
  }
  func.func @transform_6(%arg0: i32, %arg1: i32) -> (i32, i32, i32, i32) {
    %c0_i32 = arith.constant 0 : i32
    %c0_i32_0 = arith.constant 0 : i32
    %c0_i32_1 = arith.constant 0 : i32
    return %c0_i32, %arg0, %c0_i32_0, %arg1 : i32, i32, i32, i32
  }
}

</mosaic_0001>

<llo_original>
// kernel: tpu_custom_call.1
$region0: #{tpu_custom_call.1}
  #allocation0 [shape = 'u32[]', space=smem, size = 0x4, offset = 0x4, fixed_abs, tag = 'smem constant byte address 0x4 - core index']
  #allocation1 [shape = 'u32[144,128]{1,0:T(1,128)}', space=vmem, size = 0x12000, scoped, tag = 'internal scratch']
  #allocation2 [shape = 'bf16[8,384]{1,0:T(8,128)(2,1)}', space=vmem, size = 0x1800, scoped, tag = 'scratch operand']
  #allocation3 [shape = 'bf16[72,256]{1,0:T(8,128)(2,1)}', space=vmem, size = 0x9000, scoped, tag = 'scratch operand']
  #allocation4 [shape = 's32[1]{0}', space=sflag, size = 0x4, scoped, tag = 'scratch operand']
  #allocation15 [shape = 's32[]', space=sflag, size = 0x4, offset = 0, fixed_abs, tag = 'sflag constant byte address 0x0 - dummy sync flag']
  #allocation16 [shape = 's32[]', space=sflag, size = 0x4, offset = 0, fixed_abs, tag = 'sflag constant byte address 0x0 - dummy sync flag']
  #allocation17 [shape = 'u32[]', space=smem, size = 0x4, offset = 0x44, fixed_abs, tag = 'smem constant byte address 0x44 - assertion arg 0']
  #allocation18 [shape = 'u32[]', space=smem, size = 0x4, offset = 0x48, fixed_abs, tag = 'smem constant byte address 0x48 - assertion arg 1']
  %s0 = inlined_call_operand.hbm [shape: bf16[2,8,384], index: 0, kind: input, shape index: {}]
  %s1 = inlined_call_operand.hbm [shape: bf16[4,8,256], index: 1, kind: input, shape index: {}]
  %s2 = inlined_call_operand.hbm [shape: bf16[8,8], index: 2, kind: input, shape index: {}]
  %s3 = inlined_call_operand.hbm [shape: bf16[8,72], index: 3, kind: input, shape index: {}]
  %s4 = inlined_call_operand.hbm [shape: bf16[8,72], index: 4, kind: input, shape index: {}]
  %s5 = inlined_call_operand.hbm [shape: f32[3,8,1], index: 5, kind: input, shape index: {}]
  %s6 = inlined_call_operand.hbm [shape: f32[3,2,8,256], index: 6, kind: output, shape index: {}]
  %s7 = sld [smem:[#allocation0]]
  $region77: #{tpu_custom_call.1} parent=0
    _
  %s9 = ssub.s32 1, %s7
  %s10 = scalar_select 0, %s9, %s7
  $region1: #{tpu_custom_call.1} parent=0
    #allocation5 [shape = 'u8[16384]{0}', space=vmem, size = 0x4000, scoped, tag = 'input window, operand 1, single buffered']
    #allocation6 [shape = 's32[2]{0}', space=sflag, size = 0x8, scoped, tag = 'scoped memory for tpu_custom_call.1']
    #allocation7 [shape = 's32[2]{0}', space=sflag, size = 0x8, scoped, tag = 'scoped memory for tpu_custom_call.1']
    #allocation8 [shape = 'u8[2048]{0}', space=vmem, size = 0x800, scoped, tag = 'input window, operand 2, single buffered']
    #allocation9 [shape = 's32[1]{0}', space=sflag, size = 0x4, scoped, tag = 'scoped memory for tpu_custom_call.1']
    #allocation10 [shape = 'u8[2048]{0}', space=vmem, size = 0x800, scoped, tag = 'input window, operand 3, single buffered']
    #allocation11 [shape = 'u8[2048]{0}', space=vmem, size = 0x800, scoped, tag = 'input window, operand 4, single buffered']
    #allocation12 [shape = 's32[1]{0}', space=sflag, size = 0x4, scoped, tag = 'scoped memory for tpu_custom_call.1']
    #allocation13 [shape = 'u8[12288]{0}', space=vmem, size = 0x3000, scoped, tag = 'input window, operand 5, single buffered']
    #allocation14 [shape = 'u8[49152]{0}', space=vmem, size = 0xc000, scoped, tag = 'output window, operand 0']
    %11 = vsyncpa [#allocation6], 0
    %12 = vsyncpa [#allocation9], 0
    %13 = vsyncpa [#allocation12], 0
    %14 = vsyncpa [#allocation7], 0
    %s15 = scalar_lea.sflag [#allocation7], 1
    %16 = vsyncpa %s15, 0
    loop: start=0, step=1, limit=4
    $region2: #{tpu_custom_call.1} parent=1 // loop_pre_header
      _
    $region3: #{tpu_custom_call.1} parent=1 // loop_header
      %s18 = sphi 0, %s22
      %p19 = scmp.ge.s32.totalorder %s18, 4
      %s25 = sphi 0, %s37
      %s26 = sphi 0, %s33
      %s27 = sphi 0, %s25
      %s28 = sphi 0, %s26
      %s29 = sphi 0, %s27
      %s30 = sphi 0, %s28
      %s38 = sphi 0, %s38
      %s40 = sphi 0, %s38
      %s41 = sphi 0, %s40
      %s55 = sphi 0, %s41
      %s59 = sphi 0, %s59
      %s61 = sphi 0, %s59
      %s62 = sphi 0, %s61
      %s76 = sphi 0, %s62
      %s80 = sphi 0, %s80
      %s82 = sphi 0, %s80
      %s83 = sphi 0, %s82
      %s97 = sphi 0, %s83
      %s101 = sphi 0, %s101
      %s103 = sphi 0, %s101
      %s104 = sphi 0, %s103
      %s118 = sphi 0, %s104
      %s122 = sphi 0, %s122
      %s124 = sphi 0, %s122
      %s125 = sphi 0, %s124
      %s139 = sphi 0, %s125
      %s147 = sphi 0, %s149
      %s150 = sphi 0, %s147
      %s151 = sphi 0, %s150
      %s167 = sphi 0, %s151
    $region4: #{tpu_custom_call.1} parent=1 // loop_header_branch
      %21 = sbr.rel (%p19) target = $region8
    $region5: #{tpu_custom_call.1} parent=1 // loop_body
      %s23 = ssub.s32 %s18, 1
      %s24 = ssub.s32 %s18, 2
      %s31 = sadd.s32 1, %s26
      %p32 = scmp.ge.s32.totalorder %s31, 1
      %s33 = scalar_select %p32, 0, %s31
      %s34 = sadd.s32 1, %s25
      %s35 = scalar_select %p32, %s34, %s25
      %p36 = scmp.ge.s32.totalorder %s35, 2
      %s37 = scalar_select %p36, 0, %s35
      %s39 = sadd.s32 %s38, 1
      %p42 = scmp.eq.s32.totalorder %s18, 1
      %p43 = scmp.ne.s32.totalorder %s38, %s40
      %p44 = scmp.eq.s32.totalorder %s18, 0
      %p45 = por %p43, %p44
      %p46 = scmp.ne.s32.totalorder %s38, %s40
      %p47 = scmp.eq.s32.totalorder %s23, 1
      %p48 = por %p46, %p47
      %p49 = scmp.ne.s32.totalorder %s40, %s41
      %p50 = scmp.eq.s32.totalorder %s23, 0
      %p51 = por %p49, %p50
      %p52 = scmp.ne.s32.totalorder %s40, %s41
      %p53 = scmp.eq.s32.totalorder %s24, 1
      %p54 = por %p52, %p53
      %p56 = scmp.ne.s32.totalorder %s41, %s55
      %p57 = scmp.eq.s32.totalorder %s24, 0
      %p58 = por %p56, %p57
      %s60 = sadd.s32 %s59, 1
      %p63 = scmp.eq.s32.totalorder %s18, 1
      %p64 = scmp.ne.s32.totalorder %s59, %s61
      %p65 = scmp.eq.s32.totalorder %s18, 0
      %p66 = por %p64, %p65
      %p67 = scmp.ne.s32.totalorder %s59, %s61
      %p68 = scmp.eq.s32.totalorder %s23, 1
      %p69 = por %p67, %p68
      %p70 = scmp.ne.s32.totalorder %s61, %s62
      %p71 = scmp.eq.s32.totalorder %s23, 0
      %p72 = por %p70, %p71
      %p73 = scmp.ne.s32.totalorder %s61, %s62
      %p74 = scmp.eq.s32.totalorder %s24, 1
      %p75 = por %p73, %p74
      %p77 = scmp.ne.s32.totalorder %s62, %s76
      %p78 = scmp.eq.s32.totalorder %s24, 0
      %p79 = por %p77, %p78
      %s81 = sadd.s32 %s80, 1
      %p84 = scmp.eq.s32.totalorder %s18, 1
      %p85 = scmp.ne.s32.totalorder %s80, %s82
      %p86 = scmp.eq.s32.totalorder %s18, 0
      %p87 = por %p85, %p86
      %p88 = scmp.ne.s32.totalorder %s80, %s82
      %p89 = scmp.eq.s32.totalorder %s23, 1
      %p90 = por %p88, %p89
      %p91 = scmp.ne.s32.totalorder %s82, %s83
      %p92 = scmp.eq.s32.totalorder %s23, 0
      %p93 = por %p91, %p92
      %p94 = scmp.ne.s32.totalorder %s82, %s83
      %p95 = scmp.eq.s32.totalorder %s24, 1
      %p96 = por %p94, %p95
      %p98 = scmp.ne.s32.totalorder %s83, %s97
      %p99 = scmp.eq.s32.totalorder %s24, 0
      %p100 = por %p98, %p99
      %s102 = sadd.s32 %s101, 1
      %p105 = scmp.eq.s32.totalorder %s18, 1
      %p106 = scmp.ne.s32.totalorder %s101, %s103
      %p107 = scmp.eq.s32.totalorder %s18, 0
      %p108 = por %p106, %p107
      %p109 = scmp.ne.s32.totalorder %s101, %s103
      %p110 = scmp.eq.s32.totalorder %s23, 1
      %p111 = por %p109, %p110
      %p112 = scmp.ne.s32.totalorder %s103, %s104
      %p113 = scmp.eq.s32.totalorder %s23, 0
      %p114 = por %p112, %p113
      %p115 = scmp.ne.s32.totalorder %s103, %s104
      %p116 = scmp.eq.s32.totalorder %s24, 1
      %p117 = por %p115, %p116
      %p119 = scmp.ne.s32.totalorder %s104, %s118
      %p120 = scmp.eq.s32.totalorder %s24, 0
      %p121 = por %p119, %p120
      %s123 = sadd.s32 %s122, 1
      %p126 = scmp.eq.s32.totalorder %s18, 1
      %p127 = scmp.ne.s32.totalorder %s122, %s124
      %p128 = scmp.eq.s32.totalorder %s18, 0
      %p129 = por %p127, %p128
      %p130 = scmp.ne.s32.totalorder %s122, %s124
      %p131 = scmp.eq.s32.totalorder %s23, 1
      %p132 = por %p130, %p131
      %p133 = scmp.ne.s32.totalorder %s124, %s125
      %p134 = scmp.eq.s32.totalorder %s23, 0
      %p135 = por %p133, %p134
      %p136 = scmp.ne.s32.totalorder %s124, %s125
      %p137 = scmp.eq.s32.totalorder %s24, 1
      %p138 = por %p136, %p137
      %p140 = scmp.ne.s32.totalorder %s125, %s139
      %p141 = scmp.eq.s32.totalorder %s24, 0
      %p142 = por %p140, %p141
      %s143 = ssub.s32 %s25, %s37
      %s144 = ssub.s32 %s26, %s33
      %s145 = sor.u32 %s143, %s144
      %p146 = scmp.eq.s32.totalorder %s145, 0
      %s148 = sadd.s32 %s147, 1
      %s149 = scalar_select %p146, %s147, %s148
      %p152 = pneg %p146
      %p153 = scmp.eq.s32.totalorder %s18, 1
      %p154 = por %p152, %p153
      %p155 = scmp.ne.s32.totalorder %s147, %s150
      %p156 = scmp.eq.s32.totalorder %s18, 0
      %p157 = por %p155, %p156
      %p158 = scmp.ne.s32.totalorder %s147, %s150
      %p159 = scmp.eq.s32.totalorder %s23, 1
      %p160 = por %p158, %p159
      %p161 = scmp.ne.s32.totalorder %s150, %s151
      %p162 = scmp.eq.s32.totalorder %s23, 0
      %p163 = por %p161, %p162
      %p164 = scmp.ne.s32.totalorder %s150, %s151
      %p165 = scmp.eq.s32.totalorder %s24, 1
      %p166 = por %p164, %p165
      %p168 = scmp.ne.s32.totalorder %s151, %s167
      %p169 = scmp.eq.s32.totalorder %s24, 0
      %p170 = por %p168, %p169
      %p171 = scmp.le.s32.totalorder 1, %s18
      %p172 = scmp.lt.s32.totalorder %s18, 3
      %p173 = pnand %p171, %p172
      %p174 = pneg %p173
      // Predicated region
      $region9: #{tpu_custom_call.1} parent=5 // pred_check
        _
      $region10: #{tpu_custom_call.1} parent=5 // pred_check_branch
        %176 = sbr.rel (%p173) target = $region12
      $region11: #{tpu_custom_call.1} parent=5 // pred_region
        %s177 = ssub.s32 %s18, 1
        // Predicated region
        $region13: #{tpu_custom_call.1} parent=11 // pred_check
          %p178 = pneg %p51
        $region14: #{tpu_custom_call.1} parent=11 // pred_check_branch
          %180 = sbr.rel (%p178) target = $region16
        $region15: #{tpu_custom_call.1} parent=11 // pred_region
          %s182 = ssub.s32 512, 512
          %183 = vsyncadd [#allocation6], %s182
          %s184 = sshll.u32 [#allocation5], 4
          %s185 = int_to_ptr.vmem [resolvable:$true] %s184
          %190 = dma.hbm_to_vmem [thread:$0]  %s1, 512, %s185, [#allocation6], 128, 128, 8
        $region16: #{tpu_custom_call.1} parent=11 // pred_fallthru
          _
        // Predicated region
        $region17: #{tpu_custom_call.1} parent=11 // pred_check
          %p191 = pneg %p72
        $region18: #{tpu_custom_call.1} parent=11 // pred_check_branch
          %193 = sbr.rel (%p191) target = $region20
        $region19: #{tpu_custom_call.1} parent=11 // pred_region
          %s195 = ssub.s32 64, 64
          %196 = vsyncadd [#allocation9], %s195
          %s198 = sshll.u32 [#allocation8], 4
          %s199 = int_to_ptr.vmem [resolvable:$true] %s198
          %201 = dma.hbm_to_vmem [thread:$0]  %s2, 64, %s199, [#allocation9]
        $region20: #{tpu_custom_call.1} parent=11 // pred_fallthru
          _
        // Predicated region
        $region21: #{tpu_custom_call.1} parent=11 // pred_check
          %p202 = pneg %p93
        $region22: #{tpu_custom_call.1} parent=11 // pred_check_branch
          %204 = sbr.rel (%p202) target = $region24
        $region23: #{tpu_custom_call.1} parent=11 // pred_region
          %s206 = ssub.s32 64, 64
          %207 = vsyncadd [#allocation9], %s206
          %s209 = sshll.u32 [#allocation10], 4
          %s210 = int_to_ptr.vmem [resolvable:$true] %s209
          %212 = dma.hbm_to_vmem [thread:$0]  %s3, 64, %s210, [#allocation9]
        $region24: #{tpu_custom_call.1} parent=11 // pred_fallthru
          _
        // Predicated region
        $region25: #{tpu_custom_call.1} parent=11 // pred_check
          %p213 = pneg %p114
        $region26: #{tpu_custom_call.1} parent=11 // pred_check_branch
          %215 = sbr.rel (%p213) target = $region28
        $region27: #{tpu_custom_call.1} parent=11 // pred_region
          %s217 = ssub.s32 64, 64
          %218 = vsyncadd [#allocation12], %s217
          %s220 = sshll.u32 [#allocation11], 4
          %s221 = int_to_ptr.vmem [resolvable:$true] %s220
          %223 = dma.hbm_to_vmem [thread:$0]  %s4, 64, %s221, [#allocation12]
        $region28: #{tpu_custom_call.1} parent=11 // pred_fallthru
          _
        // Predicated region
        $region29: #{tpu_custom_call.1} parent=11 // pred_check
          %p224 = pneg %p135
        $region30: #{tpu_custom_call.1} parent=11 // pred_check_branch
          %226 = sbr.rel (%p224) target = $region32
        $region31: #{tpu_custom_call.1} parent=11 // pred_region
          %s228 = ssub.s32 384, 384
          %229 = vsyncadd [#allocation12], %s228
          %s230 = sshll.u32 [#allocation13], 4
          %s231 = int_to_ptr.vmem [resolvable:$true] %s230
          %236 = dma.hbm_to_vmem [thread:$0]  %s5, 384, %s231, [#allocation12], 128, 128, 8
        $region32: #{tpu_custom_call.1} parent=11 // pred_fallthru
          _
      $region12: #{tpu_custom_call.1} parent=5 // pred_fallthru
        _
      %p237 = scmp.lt.s32.totalorder %s18, 2
      // Predicated region
      $region33: #{tpu_custom_call.1} parent=5 // pred_check
        %p238 = pneg %p237
      $region34: #{tpu_custom_call.1} parent=5 // pred_check_branch
        %240 = sbr.rel (%p238) target = $region36
      $region35: #{tpu_custom_call.1} parent=5 // pred_region
        _
      $region36: #{tpu_custom_call.1} parent=5 // pred_fallthru
        _
      %p241 = scmp.le.s32.totalorder 1, %s18
      %p242 = scmp.lt.s32.totalorder %s18, 3
      %p243 = pnand %p241, %p242
      %p244 = pneg %p243
      // Predicated region
      $region37: #{tpu_custom_call.1} parent=5 // pred_check
        _
      $region38: #{tpu_custom_call.1} parent=5 // pred_check_branch
        %246 = sbr.rel (%p243) target = $region40
      $region39: #{tpu_custom_call.1} parent=5 // pred_region
        %s247 = ssub.s32 %s18, 1
        // Predicated region
        $region41: #{tpu_custom_call.1} parent=39 // pred_check
          %p248 = pneg %p51
        $region42: #{tpu_custom_call.1} parent=39 // pred_check_branch
          %250 = sbr.rel (%p248) target = $region44
        $region43: #{tpu_custom_call.1} parent=39 // pred_region
          %251 = dma.done [#allocation6], 512
        $region44: #{tpu_custom_call.1} parent=39 // pred_fallthru
          _
        // Predicated region
        $region45: #{tpu_custom_call.1} parent=39 // pred_check
          %p252 = pneg %p72
        $region46: #{tpu_custom_call.1} parent=39 // pred_check_branch
          %254 = sbr.rel (%p252) target = $region48
        $region47: #{tpu_custom_call.1} parent=39 // pred_region
          %255 = dma.done [#allocation9], 64
        $region48: #{tpu_custom_call.1} parent=39 // pred_fallthru
          _
        // Predicated region
        $region49: #{tpu_custom_call.1} parent=39 // pred_check
          %p256 = pneg %p93
        $region50: #{tpu_custom_call.1} parent=39 // pred_check_branch
          %258 = sbr.rel (%p256) target = $region52
        $region51: #{tpu_custom_call.1} parent=39 // pred_region
          %259 = dma.done [#allocation9], 64
        $region52: #{tpu_custom_call.1} parent=39 // pred_fallthru
          _
        // Predicated region
        $region53: #{tpu_custom_call.1} parent=39 // pred_check
          %p260 = pneg %p114
        $region54: #{tpu_custom_call.1} parent=39 // pred_check_branch
          %262 = sbr.rel (%p260) target = $region56
        $region55: #{tpu_custom_call.1} parent=39 // pred_region
          %263 = dma.done [#allocation12], 64
        $region56: #{tpu_custom_call.1} parent=39 // pred_fallthru
          _
        // Predicated region
        $region57: #{tpu_custom_call.1} parent=39 // pred_check
          %p264 = pneg %p135
        $region58: #{tpu_custom_call.1} parent=39 // pred_check_branch
          %266 = sbr.rel (%p264) target = $region60
        $region59: #{tpu_custom_call.1} parent=39 // pred_region
          %267 = dma.done [#allocation12], 384
        $region60: #{tpu_custom_call.1} parent=39 // pred_fallthru
          _
        %p268 = pneg %p51
        %p269 = pneg %p48
        %p270 = pneg %p72
        %p271 = pneg %p69
        %p272 = pneg %p93
        %p273 = pneg %p90
        %p274 = pneg %p114
        %p275 = pneg %p111
        %p276 = pneg %p135
        %p277 = pneg %p132
        %p278 = pneg %p163
        %p279 = pneg %p160
        %s280 = sand.u32 %s150, 1
        %s281 = scalar_lea.sflag [#allocation7], %s280
        %s282 = sand.u32 %s150, 1
        %s283 = smul.addr %s282, 48
        %s284 = scalar_lea.vmem [#allocation14], %s283
        %s285 = smul.u32 2, %s28
        %s287 = smul.u32 %s28, 256
        %s288 = sshra.s32 %s287, 7
        %s289 = sand.u32 %s287, 127
        %s290 = smul.u32 %s27, 3
        %s291 = sadd.s32 %s288, %s290
        %s292 = smul.addr %s291, 64
        %s293 = scalar_lea.hbm %s0, %s292
        // Predicated region
        $region61: #{tpu_custom_call.1} parent=39 // pred_check
          _
        $region62: #{tpu_custom_call.1} parent=39 // pred_check_branch
          %295 = sbr.rel target = $region64
        $region63: #{tpu_custom_call.1} parent=39 // pred_region
          %296 = sst [smem:[#allocation17]] [#allocation16]
          %297 = sst [smem:[#allocation18]] [#allocation15]
        $region64: #{tpu_custom_call.1} parent=39 // pred_fallthru
          _
        %299 = shalt.err (0)
        %s301 = sshll.u32 [#allocation2], 4
        %s302 = int_to_ptr.vmem [resolvable:$true] %s301
        %304 = dma.hbm_to_vmem [thread:$0]  %s293, 192, %s302, [#allocation4]
        %s305 = smul.u32 4, 1
        %s306 = smul.u32 %s305, 3
        %s307 = sshll.u32 %s306, 4
        %308 = dma.done [#allocation4], %s307
        %v309 = vld [vmem:[#allocation5] sm:$0xff]
        %s310 = scalar_lea.vmem [#allocation5], 8
        %v311 = vld [vmem:[%s310] sm:$0xff]
        %s312 = scalar_lea.vmem [#allocation5], 16
        %v313 = vld [vmem:[%s312] sm:$0xff]
        %s314 = scalar_lea.vmem [#allocation5], 24
        %v315 = vld [vmem:[%s314] sm:$0xff]
        %v316 = vld [vmem:[#allocation2] sm:$0xff]
        %v317 = vld [vmem:[#allocation2 + $0x8] sm:$0xf]
        %v318 = vld [vmem:[#allocation8] sm:$0xf]
        %v319 = vld [vmem:[#allocation13] sm:$0xff]
        %321 = vset.pattern.permute.xlu0 0
        %322 = vperm.xlu0 %321, %v319
        %v323 = vpop.permute.xlu0 %322
        %v327 = vunpack.c.l.b16 %v316
        %v328 = vunpack.c.h.b16 %v316
        %v329 = vunpack.c.l.b16 %v317
        %v330 = vpack.c.b16 %v327, %v327
        %v331 = vpack.c.b16 %v328, %v328
        %v332 = vpack.c.b16 %v329, %v329
        %333 = vrot.lane.b32.xlu0 %v330, 64
        %v334 = vpop.permute.xlu0 %333
        %335 = vrot.lane.b32.xlu0 %v331, 64
        %v336 = vpop.permute.xlu0 %335
        %337 = vrot.lane.b32.xlu0 %v332, 64
        %v338 = vpop.permute.xlu0 %337
        %vm339 = vcmask 523264
        %v340 = vsel %vm339, %v334, %v336
        %v341 = vsel %vm339, %v336, %v338
        %vm342 = vcmask 64512
        %v344 = vsel %vm342, %v318, 0
        %vm346 = vcmask 1043456
        %v348 = vsel %vm346, %v340, 0
        %v351 = vsel %vm346, %v341, 0
        %353 = vmatprep.subr.bf16.mxu0 %v351
        %354 = vmatpush1.bf16.msra.mxu0 %v348
        %355 = vmatprep.subr.bf16.mxu0 0
        %356 = vmatpush1.bf16.msra.mxu0 0
        %357 = vmatprep.subr.bf16.mxu0 0
        %358 = vmatpush1.bf16.msra.mxu0 0
        %359 = vmatprep.subr.bf16.mxu0 0
        %360 = vmatpush1.bf16.msra.mxu0 0
        %361 = vmatprep.subr.bf16.mxu0 0
        %362 = vmatpush1.bf16.msra.mxu0 0
        %363 = vmatprep.subr.bf16.mxu0 0
        %364 = vmatpush1.bf16.msra.mxu0 0
        %365 = vmatprep.subr.bf16.mxu0 0
        %366 = vmatpush1.bf16.msra.mxu0 0
        %367 = vmatprep.subr.bf16.mxu0 0
        %368 = vmatpush1.bf16.msra.mxu0 0
        %369 = vmatprep.subr.bf16.mxu0 0
        %370 = vmatpush1.bf16.msra.mxu0 0
        %371 = vmatprep.subr.bf16.mxu0 0
        %372 = vmatpush1.bf16.msra.mxu0 0
        %373 = vmatprep.subr.bf16.mxu0 0
        %374 = vmatpush1.bf16.msra.mxu0 0
        %375 = vmatprep.subr.bf16.mxu0 0
        %376 = vmatpush1.bf16.msra.mxu0 0
        %377 = vmatprep.subr.bf16.mxu0 0
        %378 = vmatpush1.bf16.msra.mxu0 0
        %379 = vmatprep.subr.bf16.mxu0 0
        %380 = vmatpush1.bf16.msra.mxu0 0
        %381 = vmatprep.subr.bf16.mxu0 0
        %382 = vmatpush1.bf16.msra.mxu0 0
        %383 = vmatprep.subr.bf16.mxu0 0
        %384 = vmatpush1.bf16.msra.mxu0 0
        %385 = vmatprep.mubr.bf16.mxu0 0
        %386 = vmatmul.mubr.bf16.gmra.mrb[0].mxu0 %v344
        %v387 = vpop.f32.mrb[0].mxu0
        %v388 = vadd.f32 %v323, %v387
        %v389 = vpop.f32.mrb[0].mxu0
        %v390 = vadd.f32 %v323, %v389
        %v391 = vpop.f32.mrb[0].mxu0
        %v392 = vpop.f32.mrb[0].mxu0
        %393 = vdwg.mxu0
        %v394 = vmax.f32 %v388, 0.0
        %v395 = vmax.f32 %v390, 0.0
        %396 = vst [vmem:[%s284] sm:$0xff] %v394
        %397 = vst [vmem:[%s284 + $0x8] sm:$0xff] %v395
        %v398 = vld [vmem:[#allocation2] sm:$0xff]
        %v399 = vld [vmem:[#allocation2 + $0x8] sm:$0xf]
        %401 = vrot.lane.b32.xlu0 %v311, 30
        %v402 = vpop.permute.xlu0 %401
        %v403 = vrot.slane %v402, 4
        %vm404 = vcmask 244736
        %v405 = vsel %vm404, %v403, %v402
        %v408 = vmul.bf16 %v398, %v405
        %v409 = vmul.bf16 %v399, %v403
        %412 = vrot.lane.b32.xlu0 %v408, 98
        %v413 = vpop.permute.xlu0 %412
        %414 = vrot.lane.b32.xlu0 %v409, 98
        %v415 = vpop.permute.xlu0 %414
        %v416 = vrot.slane %v413, 4
        %v417 = vrot.slane %v415, 4
        %vm418 = vcmask 1043456
        %v419 = vsel %vm418, %v416, %v417
        %vm420 = vcmask 801792
        %v421 = vsel %vm420, %v413, %v419
        %423 = vst [vmem:[#allocation3] sm:$0xff] %v421
        %v424 = vld [vmem:[#allocation2] sm:$0xff]
        %v425 = vld [vmem:[#allocation2 + $0x8] sm:$0xf]
        %428 = vrot.lane.b32.xlu0 %v424, 96
        %v429 = vpop.permute.xlu0 %428
        %430 = vrot.lane.b32.xlu0 %v425, 96
        %v431 = vpop.permute.xlu0 %430
        %v432 = vrot.slane %v429, 4
        %v433 = vrot.slane %v431, 4
        %v434 = vsel %vm418, %v432, %v433
        %vm435 = vcmask 785408
        %v436 = vsel %vm435, %v429, %v434
        %438 = vst [vmem:[#allocation3 + $0x8] sm:$0xff] %v436
        %v439 = vld [vmem:[#allocation2] sm:$0xff]
        %v440 = vld [vmem:[#allocation2 + $0x8] sm:$0xf]
        %442 = vrot.lane.b32.xlu0 %v313, 34
        %v443 = vpop.permute.xlu0 %442
        %v444 = vrot.slane %v443, 4
        %vm445 = vcmask 277504
        %v446 = vsel %vm445, %v444, %v443
        %v449 = vmul.bf16 %v439, %v446
        %v450 = vmul.bf16 %v440, %v444
        %453 = vrot.lane.b32.xlu0 %v449, 94
        %v454 = vpop.permute.xlu0 %453
        %455 = vrot.lane.b32.xlu0 %v450, 94
        %v456 = vpop.permute.xlu0 %455
        %v457 = vrot.slane %v454, 4
        %v458 = vrot.slane %v456, 4
        %v459 = vsel %vm418, %v457, %v458
        %vm460 = vcmask 769024
        %v461 = vsel %vm460, %v454, %v459
        %463 = vst [vmem:[#allocation3 + $0x10] sm:$0xff] %v461
        %v464 = vld [vmem:[#allocation2] sm:$0xff]
        %v465 = vld [vmem:[#allocation2 + $0x8] sm:$0xf]
        %466 = vrot.lane.b32.xlu0 %v311, 62
        %v467 = vpop.permute.xlu0 %466
        %v468 = vrot.slane %v467, 4
        %vm469 = vcmask 506880
        %v470 = vsel %vm469, %v468, %v467
        %v473 = vmul.bf16 %v464, %v470
        %v474 = vmul.bf16 %v465, %v468
        %477 = vrot.lane.b32.xlu0 %v473, 66
        %v478 = vpop.permute.xlu0 %477
        %479 = vrot.lane.b32.xlu0 %v474, 66
        %v480 = vpop.permute.xlu0 %479
        %v481 = vrot.slane %v478, 4
        %v482 = vrot.slane %v480, 4
        %v483 = vsel %vm418, %v481, %v482
        %vm484 = vcmask 539648
        %v485 = vsel %vm484, %v478, %v483
        %487 = vst [vmem:[#allocation3 + $0x18] sm:$0xff] %v485
        %v488 = vld [vmem:[#allocation2] sm:$0xff]
        %v489 = vld [vmem:[#allocation2 + $0x8] sm:$0xf]
        %492 = vrot.lane.b32.xlu0 %v488, 64
        %v493 = vpop.permute.xlu0 %492
        %494 = vrot.lane.b32.xlu0 %v489, 64
        %v495 = vpop.permute.xlu0 %494
        %v496 = vrot.slane %v493, 4
        %v497 = vrot.slane %v495, 4
        %v498 = vsel %vm418, %v496, %v497
        %v499 = vsel %vm339, %v493, %v498
        %501 = vst [vmem:[#allocation3 + $0x20] sm:$0xff] %v499
        %v502 = vld [vmem:[#allocation2] sm:$0xff]
        %v503 = vld [vmem:[#allocation2 + $0x8] sm:$0xf]
        %504 = vrot.lane.b32.xlu0 %v313, 66
        %v505 = vpop.permute.xlu0 %504
        %v506 = vrot.slane %v505, 4
        %v507 = vsel %vm484, %v506, %v505
        %v510 = vmul.bf16 %v502, %v507
        %v511 = vmul.bf16 %v503, %v506
        %514 = vrot.lane.b32.xlu0 %v510, 62
        %v515 = vpop.permute.xlu0 %514
        %516 = vrot.lane.b32.xlu0 %v511, 62
        %v517 = vpop.permute.xlu0 %516
        %v518 = vrot.slane %v515, 4
        %v519 = vrot.slane %v517, 4
        %v520 = vsel %vm418, %v518, %v519
        %v521 = vsel %vm469, %v515, %v520
        %523 = vst [vmem:[#allocation3 + $0x28] sm:$0xff] %v521
        %v524 = vld [vmem:[#allocation2] sm:$0xff]
        %v525 = vld [vmem:[#allocation2 + $0x8] sm:$0xf]
        %526 = vrot.lane.b32.xlu0 %v311, 94
        %v527 = vpop.permute.xlu0 %526
        %v528 = vrot.slane %v527, 4
        %v529 = vsel %vm460, %v528, %v527
        %v532 = vmul.bf16 %v524, %v529
        %v533 = vmul.bf16 %v525, %v528
        %536 = vrot.lane.b32.xlu0 %v532, 34
        %v537 = vpop.permute.xlu0 %536
        %538 = vrot.lane.b32.xlu0 %v533, 34
        %v539 = vpop.permute.xlu0 %538
        %v540 = vrot.slane %v537, 4
        %v541 = vrot.slane %v539, 4
        %v542 = vsel %vm418, %v540, %v541
        %v543 = vsel %vm445, %v537, %v542
        %545 = vst [vmem:[#allocation3 + $0x30] sm:$0xff] %v543
        %v546 = vld [vmem:[#allocation2] sm:$0xff]
        %v547 = vld [vmem:[#allocation2 + $0x8] sm:$0xf]
        %550 = vrot.lane.b32.xlu0 %v546, 32
        %v551 = vpop.permute.xlu0 %550
        %552 = vrot.lane.b32.xlu0 %v547, 32
        %v553 = vpop.permute.xlu0 %552
        %v554 = vrot.slane %v551, 4
        %v555 = vrot.slane %v553, 4
        %v556 = vsel %vm418, %v554, %v555
        %vm557 = vcmask 261120
        %v558 = vsel %vm557, %v551, %v556
        %560 = vst [vmem:[#allocation3 + $0x38] sm:$0xff] %v558
        %v561 = vld [vmem:[#allocation2] sm:$0xff]
        %v562 = vld [vmem:[#allocation2 + $0x8] sm:$0xf]
        %563 = vrot.lane.b32.xlu0 %v313, 98
        %v564 = vpop.permute.xlu0 %563
        %v565 = vrot.slane %v564, 4
        %v566 = vsel %vm420, %v565, %v564
        %v569 = vmul.bf16 %v561, %v566
        %v570 = vmul.bf16 %v562, %v565
        %573 = vrot.lane.b32.xlu0 %v569, 30
        %v574 = vpop.permute.xlu0 %573
        %575 = vrot.lane.b32.xlu0 %v570, 30
        %v576 = vpop.permute.xlu0 %575
        %v577 = vrot.slane %v574, 4
        %v578 = vrot.slane %v576, 4
        %v579 = vsel %vm418, %v577, %v578
        %v580 = vsel %vm404, %v574, %v579
        %582 = vst [vmem:[#allocation3 + $0x40] sm:$0xff] %v580
        %v583 = vld [vmem:[#allocation10] sm:$0xf]
        %v584 = vld [vmem:[#allocation3] sm:$0xff]
        %v585 = vld [vmem:[#allocation3 + $0x8] sm:$0xff]
        %v586 = vld [vmem:[#allocation3 + $0x10] sm:$0xff]
        %v587 = vld [vmem:[#allocation3 + $0x18] sm:$0xff]
        %v588 = vld [vmem:[#allocation3 + $0x20] sm:$0xff]
        %v589 = vld [vmem:[#allocation3 + $0x28] sm:$0xff]
        %v590 = vld [vmem:[#allocation3 + $0x30] sm:$0xff]
        %v591 = vld [vmem:[#allocation3 + $0x38] sm:$0xff]
        %v592 = vld [vmem:[#allocation3 + $0x40] sm:$0xff]
        %s593 = scalar_lea.vmem [#allocation13], 8
        %v594 = vld [vmem:[%s593] sm:$0xff]
        %596 = vset.pattern.permute.xlu0 0
        %597 = vperm.xlu0 %596, %v594
        %v598 = vpop.permute.xlu0 %597
        %v609 = vunpack.c.l.b16 %v584
        %v610 = vunpack.c.h.b16 %v584
        %v611 = vunpack.c.l.b16 %v585
        %v612 = vunpack.c.h.b16 %v585
        %v613 = vunpack.c.l.b16 %v586
        %v614 = vunpack.c.h.b16 %v586
        %v615 = vunpack.c.l.b16 %v587
        %v616 = vunpack.c.h.b16 %v587
        %v617 = vunpack.c.l.b16 %v588
        %v618 = vunpack.c.h.b16 %v588
        %v619 = vunpack.c.l.b16 %v589
        %v620 = vunpack.c.h.b16 %v589
        %v621 = vunpack.c.l.b16 %v590
        %v622 = vunpack.c.h.b16 %v590
        %v623 = vunpack.c.l.b16 %v591
        %v624 = vunpack.c.h.b16 %v591
        %v625 = vunpack.c.l.b16 %v592
        %v626 = vunpack.c.h.b16 %v592
        %v627 = vpack.c.b16 %v611, %v609
        %v628 = vpack.c.b16 %v612, %v610
        %v629 = vpack.c.b16 %v615, %v613
        %v630 = vpack.c.b16 %v616, %v614
        %v631 = vpack.c.b16 %v619, %v617
        %v632 = vpack.c.b16 %v620, %v618
        %v633 = vpack.c.b16 %v623, %v621
        %v634 = vpack.c.b16 %v624, %v622
        %v635 = vpack.c.b16 %v625, %v625
        %v636 = vpack.c.b16 %v626, %v626
        %vm645 = vcmask 588800
        %v647 = vsel %vm645, %v583, 0
        %v650 = vsel %vm346, %v635, 0
        %v653 = vsel %vm346, %v636, 0
        %655 = vmatprep.subr.bf16.mxu0 %v628
        %656 = vmatpush1.bf16.msra.mxu0 %v627
        %657 = vmatprep.subr.bf16.mxu0 %v630
        %658 = vmatpush1.bf16.msra.mxu0 %v629
        %659 = vmatprep.subr.bf16.mxu0 %v632
        %660 = vmatpush1.bf16.msra.mxu0 %v631
        %661 = vmatprep.subr.bf16.mxu0 %v634
        %662 = vmatpush1.bf16.msra.mxu0 %v633
        %663 = vmatprep.subr.bf16.mxu0 %v653
        %664 = vmatpush1.bf16.msra.mxu0 %v650
        %665 = vmatprep.subr.bf16.mxu0 0
        %666 = vmatpush1.bf16.msra.mxu0 0
        %667 = vmatprep.subr.bf16.mxu0 0
        %668 = vmatpush1.bf16.msra.mxu0 0
        %669 = vmatprep.subr.bf16.mxu0 0
        %670 = vmatpush1.bf16.msra.mxu0 0
        %671 = vmatprep.subr.bf16.mxu0 0
        %672 = vmatpush1.bf16.msra.mxu0 0
        %673 = vmatprep.subr.bf16.mxu0 0
        %674 = vmatpush1.bf16.msra.mxu0 0
        %675 = vmatprep.subr.bf16.mxu0 0
        %676 = vmatpush1.bf16.msra.mxu0 0
        %677 = vmatprep.subr.bf16.mxu0 0
        %678 = vmatpush1.bf16.msra.mxu0 0
        %679 = vmatprep.subr.bf16.mxu0 0
        %680 = vmatpush1.bf16.msra.mxu0 0
        %681 = vmatprep.subr.bf16.mxu0 0
        %682 = vmatpush1.bf16.msra.mxu0 0
        %683 = vmatprep.subr.bf16.mxu0 0
        %684 = vmatpush1.bf16.msra.mxu0 0
        %685 = vmatprep.subr.bf16.mxu0 0
        %686 = vmatpush1.bf16.msra.mxu0 0
        %687 = vmatprep.mubr.bf16.mxu0 0
        %688 = vmatmul.mubr.bf16.gmra.mrb[0].mxu0 %v647
        %v689 = vpop.f32.mrb[0].mxu0
        %v690 = vadd.f32 %v598, %v689
        %v691 = vpop.f32.mrb[0].mxu0
        %v692 = vadd.f32 %v598, %v691
        %v693 = vpop.f32.mrb[0].mxu0
        %v694 = vpop.f32.mrb[0].mxu0
        %695 = vdwg.mxu0
        %v696 = vmax.f32 %v690, 0.0
        %v697 = vmax.f32 %v692, 0.0
        %s698 = scalar_lea.vmem %s284, 16 [#allocation14]
        %699 = vst [vmem:[%s698] sm:$0xff] %v696
        %700 = vst [vmem:[%s698 + $0x8] sm:$0xff] %v697
        %v701 = vld [vmem:[#allocation2] sm:$0xff]
        %v702 = vld [vmem:[#allocation2 + $0x8] sm:$0xf]
        %704 = vrot.lane.b32.xlu0 %v309, 13
        %v705 = vpop.permute.xlu0 %704
        %v706 = vrot.slane %v705, 4
        %vm707 = vcmask 105472
        %v708 = vsel %vm707, %v706, %v705
        %v711 = vmul.bf16 %v701, %v708
        %v712 = vmul.bf16 %v702, %v706
        %715 = vrot.lane.b32.xlu0 %v711, 115
        %v716 = vpop.permute.xlu0 %715
        %717 = vrot.lane.b32.xlu0 %v712, 115
        %v718 = vpop.permute.xlu0 %717
        %v719 = vrot.slane %v716, 4
        %v720 = vrot.slane %v718, 4
        %v721 = vsel %vm418, %v719, %v720
        %vm722 = vcmask 941056
        %v723 = vsel %vm722, %v716, %v721
        %725 = vst [vmem:[#allocation3] sm:$0xff] %v723
        %v726 = vld [vmem:[#allocation2] sm:$0xff]
        %v727 = vld [vmem:[#allocation2 + $0x8] sm:$0xf]
        %730 = vrot.lane.b32.xlu0 %v726, 112
        %v731 = vpop.permute.xlu0 %730
        %732 = vrot.lane.b32.xlu0 %v727, 112
        %v733 = vpop.permute.xlu0 %732
        %v734 = vrot.slane %v731, 4
        %v735 = vrot.slane %v733, 4
        %v736 = vsel %vm418, %v734, %v735
        %vm737 = vcmask 916480
        %v738 = vsel %vm737, %v731, %v736
        %740 = vst [vmem:[#allocation3 + $0x8] sm:$0xff] %v738
        %v741 = vld [vmem:[#allocation2] sm:$0xff]
        %v742 = vld [vmem:[#allocation2 + $0x8] sm:$0xf]
        %744 = vrot.lane.b32.xlu0 %v315, 19
        %v745 = vpop.permute.xlu0 %744
        %v746 = vrot.slane %v745, 4
        %vm747 = vcmask 154624
        %v748 = vsel %vm747, %v746, %v745
        %v751 = vmul.bf16 %v741, %v748
        %v752 = vmul.bf16 %v742, %v746
        %755 = vrot.lane.b32.xlu0 %v751, 109
        %v756 = vpop.permute.xlu0 %755
        %757 = vrot.lane.b32.xlu0 %v752, 109
        %v758 = vpop.permute.xlu0 %757
        %v759 = vrot.slane %v756, 4
        %v760 = vrot.slane %v758, 4
        %v761 = vsel %vm418, %v759, %v760
        %vm762 = vcmask 891904
        %v763 = vsel %vm762, %v756, %v761
        %765 = vst [vmem:[#allocation3 + $0x10] sm:$0xff] %v763
        %v766 = vld [vmem:[#allocation2] sm:$0xff]
        %v767 = vld [vmem:[#allocation2 + $0x8] sm:$0xf]
        %768 = vrot.lane.b32.xlu0 %v309, 61
        %v769 = vpop.permute.xlu0 %768
        %v770 = vrot.slane %v769, 4
        %vm771 = vcmask 498688
        %v772 = vsel %vm771, %v770, %v769
        %v775 = vmul.bf16 %v766, %v772
        %v776 = vmul.bf16 %v767, %v770
        %779 = vrot.lane.b32.xlu0 %v775, 67
        %v780 = vpop.permute.xlu0 %779
        %781 = vrot.lane.b32.xlu0 %v776, 67
        %v782 = vpop.permute.xlu0 %781
        %v783 = vrot.slane %v780, 4
        %v784 = vrot.slane %v782, 4
        %v785 = vsel %vm418, %v783, %v784
        %vm786 = vcmask 547840
        %v787 = vsel %vm786, %v780, %v785
        %789 = vst [vmem:[#allocation3 + $0x18] sm:$0xff] %v787
        %v790 = vld [vmem:[#allocation2] sm:$0xff]
        %v791 = vld [vmem:[#allocation2 + $0x8] sm:$0xf]
        %794 = vrot.lane.b32.xlu0 %v790, 64
        %v795 = vpop.permute.xlu0 %794
        %796 = vrot.lane.b32.xlu0 %v791, 64
        %v797 = vpop.permute.xlu0 %796
        %v798 = vrot.slane %v795, 4
        %v799 = vrot.slane %v797, 4
        %v800 = vsel %vm418, %v798, %v799
        %v801 = vsel %vm339, %v795, %v800
        %803 = vst [vmem:[#allocation3 + $0x20] sm:$0xff] %v801
        %v804 = vld [vmem:[#allocation2] sm:$0xff]
        %v805 = vld [vmem:[#allocation2 + $0x8] sm:$0xf]
        %806 = vrot.lane.b32.xlu0 %v315, 67
        %v807 = vpop.permute.xlu0 %806
        %v808 = vrot.slane %v807, 4
        %v809 = vsel %vm786, %v808, %v807
        %v812 = vmul.bf16 %v804, %v809
        %v813 = vmul.bf16 %v805, %v808
        %816 = vrot.lane.b32.xlu0 %v812, 61
        %v817 = vpop.permute.xlu0 %816
        %818 = vrot.lane.b32.xlu0 %v813, 61
        %v819 = vpop.permute.xlu0 %818
        %v820 = vrot.slane %v817, 4
        %v821 = vrot.slane %v819, 4
        %v822 = vsel %vm418, %v820, %v821
        %v823 = vsel %vm771, %v817, %v822
        %825 = vst [vmem:[#allocation3 + $0x28] sm:$0xff] %v823
        %v826 = vld [vmem:[#allocation2] sm:$0xff]
        %v827 = vld [vmem:[#allocation2 + $0x8] sm:$0xf]
        %828 = vrot.lane.b32.xlu0 %v309, 109
        %v829 = vpop.permute.xlu0 %828
        %v830 = vrot.slane %v829, 4
        %v831 = vsel %vm762, %v830, %v829
        %v834 = vmul.bf16 %v826, %v831
        %v835 = vmul.bf16 %v827, %v830
        %838 = vrot.lane.b32.xlu0 %v834, 19
        %v839 = vpop.permute.xlu0 %838
        %840 = vrot.lane.b32.xlu0 %v835, 19
        %v841 = vpop.permute.xlu0 %840
        %v842 = vrot.slane %v839, 4
        %v843 = vrot.slane %v841, 4
        %v844 = vsel %vm418, %v842, %v843
        %v845 = vsel %vm747, %v839, %v844
        %847 = vst [vmem:[#allocation3 + $0x30] sm:$0xff] %v845
        %v848 = vld [vmem:[#allocation2] sm:$0xff]
        %v849 = vld [vmem:[#allocation2 + $0x8] sm:$0xf]
        %852 = vrot.lane.b32.xlu0 %v848, 16
        %v853 = vpop.permute.xlu0 %852
        %854 = vrot.lane.b32.xlu0 %v849, 16
        %v855 = vpop.permute.xlu0 %854
        %v856 = vrot.slane %v853, 4
        %v857 = vrot.slane %v855, 4
        %v858 = vsel %vm418, %v856, %v857
        %vm859 = vcmask 130048
        %v860 = vsel %vm859, %v853, %v858
        %862 = vst [vmem:[#allocation3 + $0x38] sm:$0xff] %v860
        %v863 = vld [vmem:[#allocation2] sm:$0xff]
        %v864 = vld [vmem:[#allocation2 + $0x8] sm:$0xf]
        %865 = vrot.lane.b32.xlu0 %v315, 115
        %v866 = vpop.permute.xlu0 %865
        %v867 = vrot.slane %v866, 4
        %v868 = vsel %vm722, %v867, %v866
        %v871 = vmul.bf16 %v863, %v868
        %v872 = vmul.bf16 %v864, %v867
        %875 = vrot.lane.b32.xlu0 %v871, 13
        %v876 = vpop.permute.xlu0 %875
        %877 = vrot.lane.b32.xlu0 %v872, 13
        %v878 = vpop.permute.xlu0 %877
        %v879 = vrot.slane %v876, 4
        %v880 = vrot.slane %v878, 4
        %v881 = vsel %vm418, %v879, %v880
        %v882 = vsel %vm707, %v876, %v881
        %884 = vst [vmem:[#allocation3 + $0x40] sm:$0xff] %v882
        %v885 = vld [vmem:[#allocation11] sm:$0xf]
        %v886 = vld [vmem:[#allocation3] sm:$0xff]
        %v887 = vld [vmem:[#allocation3 + $0x8] sm:$0xff]
        %v888 = vld [vmem:[#allocation3 + $0x10] sm:$0xff]
        %v889 = vld [vmem:[#allocation3 + $0x18] sm:$0xff]
        %v890 = vld [vmem:[#allocation3 + $0x20] sm:$0xff]
        %v891 = vld [vmem:[#allocation3 + $0x28] sm:$0xff]
        %v892 = vld [vmem:[#allocation3 + $0x30] sm:$0xff]
        %v893 = vld [vmem:[#allocation3 + $0x38] sm:$0xff]
        %v894 = vld [vmem:[#allocation3 + $0x40] sm:$0xff]
        %s895 = scalar_lea.vmem [#allocation13], 16
        %v896 = vld [vmem:[%s895] sm:$0xff]
        %898 = vset.pattern.permute.xlu0 0
        %899 = vperm.xlu0 %898, %v896
        %v900 = vpop.permute.xlu0 %899
        %v911 = vunpack.c.l.b16 %v886
        %v912 = vunpack.c.h.b16 %v886
        %v913 = vunpack.c.l.b16 %v887
        %v914 = vunpack.c.h.b16 %v887
        %v915 = vunpack.c.l.b16 %v888
        %v916 = vunpack.c.h.b16 %v888
        %v917 = vunpack.c.l.b16 %v889
        %v918 = vunpack.c.h.b16 %v889
        %v919 = vunpack.c.l.b16 %v890
        %v920 = vunpack.c.h.b16 %v890
        %v921 = vunpack.c.l.b16 %v891
        %v922 = vunpack.c.h.b16 %v891
        %v923 = vunpack.c.l.b16 %v892
        %v924 = vunpack.c.h.b16 %v892
        %v925 = vunpack.c.l.b16 %v893
        %v926 = vunpack.c.h.b16 %v893
        %v927 = vunpack.c.l.b16 %v894
        %v928 = vunpack.c.h.b16 %v894
        %v929 = vpack.c.b16 %v913, %v911
        %v930 = vpack.c.b16 %v914, %v912
        %v931 = vpack.c.b16 %v917, %v915
        %v932 = vpack.c.b16 %v918, %v916
        %v933 = vpack.c.b16 %v921, %v919
        %v934 = vpack.c.b16 %v922, %v920
        %v935 = vpack.c.b16 %v925, %v923
        %v936 = vpack.c.b16 %v926, %v924
        %v937 = vpack.c.b16 %v927, %v927
        %v938 = vpack.c.b16 %v928, %v928
        %v948 = vsel %vm645, %v885, 0
        %v951 = vsel %vm346, %v937, 0
        %v954 = vsel %vm346, %v938, 0
        %956 = vmatprep.subr.bf16.mxu0 %v930
        %957 = vmatpush1.bf16.msra.mxu0 %v929
        %958 = vmatprep.subr.bf16.mxu0 %v932
        %959 = vmatpush1.bf16.msra.mxu0 %v931
        %960 = vmatprep.subr.bf16.mxu0 %v934
        %961 = vmatpush1.bf16.msra.mxu0 %v933
        %962 = vmatprep.subr.bf16.mxu0 %v936
        %963 = vmatpush1.bf16.msra.mxu0 %v935
        %964 = vmatprep.subr.bf16.mxu0 %v954
        %965 = vmatpush1.bf16.msra.mxu0 %v951
        %966 = vmatprep.subr.bf16.mxu0 0
        %967 = vmatpush1.bf16.msra.mxu0 0
        %968 = vmatprep.subr.bf16.mxu0 0
        %969 = vmatpush1.bf16.msra.mxu0 0
        %970 = vmatprep.subr.bf16.mxu0 0
        %971 = vmatpush1.bf16.msra.mxu0 0
        %972 = vmatprep.subr.bf16.mxu0 0
        %973 = vmatpush1.bf16.msra.mxu0 0
        %974 = vmatprep.subr.bf16.mxu0 0
        %975 = vmatpush1.bf16.msra.mxu0 0
        %976 = vmatprep.subr.bf16.mxu0 0
        %977 = vmatpush1.bf16.msra.mxu0 0
        %978 = vmatprep.subr.bf16.mxu0 0
        %979 = vmatpush1.bf16.msra.mxu0 0
        %980 = vmatprep.subr.bf16.mxu0 0
        %981 = vmatpush1.bf16.msra.mxu0 0
        %982 = vmatprep.subr.bf16.mxu0 0
        %983 = vmatpush1.bf16.msra.mxu0 0
        %984 = vmatprep.subr.bf16.mxu0 0
        %985 = vmatpush1.bf16.msra.mxu0 0
        %986 = vmatprep.subr.bf16.mxu0 0
        %987 = vmatpush1.bf16.msra.mxu0 0
        %988 = vmatprep.mubr.bf16.mxu0 0
        %989 = vmatmul.mubr.bf16.gmra.mrb[0].mxu0 %v948
        %v990 = vpop.f32.mrb[0].mxu0
        %v991 = vadd.f32 %v900, %v990
        %v992 = vpop.f32.mrb[0].mxu0
        %v993 = vadd.f32 %v900, %v992
        %v994 = vpop.f32.mrb[0].mxu0
        %v995 = vpop.f32.mrb[0].mxu0
        %996 = vdwg.mxu0
        %v997 = vmax.f32 %v991, 0.0
        %v998 = vmax.f32 %v993, 0.0
        %s999 = scalar_lea.vmem %s284, 32 [#allocation14]
        %1000 = vst [vmem:[%s999] sm:$0xff] %v997
        %1001 = vst [vmem:[%s999 + $0x8] sm:$0xff] %v998
        %s1002 = sand.u32 %s150, 1
        %s1003 = scalar_lea.sflag [#allocation7], %s1002
        %s1004 = sand.u32 %s150, 1
        %s1005 = smul.addr %s1004, 48
        %s1006 = scalar_lea.vmem [#allocation14], %s1005
        // Predicated region
        $region65: #{tpu_custom_call.1} parent=39 // pred_check
          %p1007 = pneg %p160
        $region66: #{tpu_custom_call.1} parent=39 // pred_check_branch
          %1009 = sbr.rel (%p1007) target = $region68
        $region67: #{tpu_custom_call.1} parent=39 // pred_region
          %s1010 = smul.u32 2, %s28
          %s1012 = ssub.s32 768, 768
          %1013 = vsyncadd %s1003, %s1012
          %s1014 = smul.addr %s27, 2
          %s1015 = sadd.s32 %s1010, %s1014
          %s1016 = smul.addr %s1015, 128
          %s1017 = scalar_lea.hbm %s6, %s1016
          %s1018 = sshll.u32 %s1006, 4
          %s1019 = int_to_ptr.vmem [resolvable:$true] %s1018
          %1024 = dma.vmem_to_hbm [thread:$0]  %s1019, 768, %s1017, %s1003, 256, 512, 16
        $region68: #{tpu_custom_call.1} parent=39 // pred_fallthru
          _
      $region40: #{tpu_custom_call.1} parent=5 // pred_fallthru
        _
      %p1025 = scmp.le.s32.totalorder 2, %s18
      // Predicated region
      $region69: #{tpu_custom_call.1} parent=5 // pred_check
        %p1026 = pneg %p1025
      $region70: #{tpu_custom_call.1} parent=5 // pred_check_branch
        %1028 = sbr.rel (%p1026) target = $region72
      $region71: #{tpu_custom_call.1} parent=5 // pred_region
        %s1029 = ssub.s32 %s18, 2
        // Predicated region
        $region73: #{tpu_custom_call.1} parent=71 // pred_check
          %p1030 = pneg %p166
        $region74: #{tpu_custom_call.1} parent=71 // pred_check_branch
          %1032 = sbr.rel (%p1030) target = $region76
        $region75: #{tpu_custom_call.1} parent=71 // pred_region
          %s1033 = sand.u32 %s151, 1
          %s1034 = scalar_lea.sflag [#allocation7], %s1033
          %s1035 = sand.u32 %s151, 1
          %s1036 = smul.addr %s1035, 48
          %s1037 = scalar_lea.vmem [#allocation14], %s1036
          %1038 = dma.done %s1034, 768
        $region76: #{tpu_custom_call.1} parent=71 // pred_fallthru
          _
      $region72: #{tpu_custom_call.1} parent=5 // pred_fallthru
        _
    $region6: #{tpu_custom_call.1} parent=1 // loop_footer
      %s22 = sadd.s32 1, %s18
    $region7: #{tpu_custom_call.1} parent=1 // loop_footer_branch
      %17 = sbr.rel target = $region3
    $region8: #{tpu_custom_call.1} parent=1 // loop_exit
      _
    %1039 = vsyncpa [#allocation6], 1
    %s1040 = scalar_lea.sflag [#allocation6], 1
    %1041 = vsyncpa %s1040, 1
    %1042 = vsyncpa [#allocation9], 1
    %1043 = vsyncpa [#allocation12], 1
    %1044 = vsyncpa [#allocation7], 1
    %s1045 = scalar_lea.sflag [#allocation7], 1
    %1046 = vsyncpa %s1045, 1
  %1047 = vsyncmov [#allocation4]
  %s1048 = vpop.sfrf %1047
  %p1049 = scmp.eq.s32.totalorder %s1048, 0
  %p1050 = pneg %p1049
  %1052 = shalt.err (%p1050)

</llo_original>
